<compile_context>
chip_gen: v6e
topology: v6e:2x2x1
jax: 0.10.0
libtpu: 0.0.40
codegen_flags: <defaults>
</compile_context>

<pallas_src>
import time

import jax
import jax.numpy as jnp
import numpy as np
from jax.experimental import pallas as pl
from jax.experimental.pallas import tpu as pltpu


# f32 slab column layout: [score, h_score, o_score, pa_max, h_cat_score, o_cat_score,
#                          boxes(4), pair_actions(A)]           -> width 10 + A
# i32 slab column layout: [label, h_index, o_index, pa_index, h_cat_label, o_cat_label]
_NI = 6


def _postprocess_kernel(
    logits_ref,   # (Bt, Q, C1)  pred_logits
    bbox_ref,     # (Bt, Q, 4)   pred_boxes (cx, cy, w, h)
    act_ref,      # (Bt, Q, A)   pred_actions
    hidx_ref,     # (Bt, Q, Q)   pred_hidx
    oidx_ref,     # (Bt, Q, Q)   pred_oidx
    scale_ref,    # (Bt, 1, 4)   [img_w, img_h, img_w, img_h]
    f32_ref,      # (Bt, Q, 10+A) packed float outputs
    i32_ref,      # (Bt, Q, 6)    packed int outputs
):
    # ---- class head: softmax-free scores / labels (drop trailing "no-object") ----
    logits = logits_ref[...]                                   # (Bt, Q, C1)
    m = jnp.max(logits, axis=-1, keepdims=True)
    z = jnp.sum(jnp.exp(logits - m), axis=-1, keepdims=True)
    logits_fg = logits[..., :-1]                               # (Bt, Q, C)
    max_fg = jnp.max(logits_fg, axis=-1, keepdims=True)
    scores = (jnp.exp(max_fg - m) / z)[..., 0]                 # (Bt, Q)
    labels = jnp.argmax(logits_fg, axis=-1).astype(jnp.int32)  # (Bt, Q)

    # ---- boxes: cxcywh -> xyxy, scaled by image size ----
    b = bbox_ref[...]                                          # (Bt, Q, 4)
    cxcy = b[..., 0:2]
    half_wh = 0.5 * b[..., 2:4]
    xyxy = jnp.concatenate([cxcy - half_wh, cxcy + half_wh], axis=-1)
    boxes = xyxy * scale_ref[...]                              # (Bt,1,4) broadcasts

    # ---- pair actions: sigmoid + per-query max/argmax over actions ----
    pa = 1.0 / (1.0 + jnp.exp(-act_ref[...]))                  # (Bt, Q, A)
    pa_max = jnp.max(pa, axis=-1)                              # (Bt, Q)
    pa_idx = jnp.argmax(pa, axis=-1).astype(jnp.int32)         # (Bt, Q)

    # ---- h / o index heads: softmax-free max/argmax over query slots ----
    def head(x_ref):
        x = x_ref[...]                                         # (Bt, Q, Q)
        xmax = jnp.max(x, axis=-1, keepdims=True)
        denom = jnp.sum(jnp.exp(x - xmax), axis=-1)            # (Bt, Q)
        score = 1.0 / denom                                    # == max(softmax(x))
        index = jnp.argmax(x, axis=-1).astype(jnp.int32)       # == argmax(softmax(x))
        return score, index

    h_score, h_index = head(hidx_ref)
    o_score, o_index = head(oidx_ref)

    # ---- scores/labels gathers at h_index / o_index via one-hot @ payload (MXU) ----
    Bt, Q, _ = hidx_ref.shape
    q_iota = jax.lax.broadcasted_iota(jnp.int32, (Bt, Q, Q), 2)
    h_oh = (q_iota == h_index[..., None]).astype(jnp.float32)  # (Bt, Q, Q)
    o_oh = (q_iota == o_index[..., None]).astype(jnp.float32)
    payload = jnp.stack([scores, labels.astype(jnp.float32)], axis=-1)   # (Bt, Q, 2)
    h_gather = jnp.einsum('bij,bjk->bik', h_oh, payload,
                          preferred_element_type=jnp.float32)  # (Bt, Q, 2)
    o_gather = jnp.einsum('bij,bjk->bik', o_oh, payload,
                          preferred_element_type=jnp.float32)
    h_cat_score = h_gather[..., 0]
    h_cat_label = jnp.round(h_gather[..., 1]).astype(jnp.int32)
    o_cat_score = o_gather[..., 0]
    o_cat_label = jnp.round(o_gather[..., 1]).astype(jnp.int32)

    # ---- packed lane-dense stores: one f32 slab, one i32 slab ----
    f32_ref[...] = jnp.concatenate(
        [scores[..., None], h_score[..., None], o_score[..., None],
         pa_max[..., None], h_cat_score[..., None], o_cat_score[..., None],
         boxes, pa], axis=-1)
    i32_ref[...] = jnp.concatenate(
        [labels[..., None], h_index[..., None], o_index[..., None],
         pa_idx[..., None], h_cat_label[..., None], o_cat_label[..., None]], axis=-1)


def _choose_bt(B, per_batch_bytes, target_bytes=1 << 20):
    """Largest divisor of B whose per-step traffic stays <= target, preferring to
    keep >= 2 grid steps so the batch grid can shard across TensorCores."""
    divisors = [d for d in range(1, B + 1) if B % d == 0]
    fits = [d for d in divisors if d * per_batch_bytes <= target_bytes] or [1]
    multi_step = [d for d in fits if B // d >= 2]
    return max(multi_step) if multi_step else max(fits)


def _run_pallas(pred_logits, pred_boxes, pred_actions, pred_hidx, pred_oidx, scale_fct):
    B, Q, C1 = pred_logits.shape
    A = pred_actions.shape[-1]
    NF = 10 + A

    per_batch_bytes = 4 * (Q * C1 + Q * 4 + Q * A + 2 * Q * Q + 4     # inputs
                           + Q * NF + Q * _NI)                        # outputs
    Bt = _choose_bt(B, per_batch_bytes)
    grid = (B // Bt,)

    def spec3(d):
        return pl.BlockSpec((Bt, Q, d), lambda b: (b, 0, 0))

    in_specs = [
        spec3(C1),                                      # pred_logits
        spec3(4),                                       # pred_boxes
        spec3(A),                                       # pred_actions
        spec3(Q),                                       # pred_hidx
        spec3(Q),                                       # pred_oidx
        pl.BlockSpec((Bt, 1, 4), lambda b: (b, 0, 0)),  # scale_fct (B,1,4)
    ]
    out_shapes = (
        jax.ShapeDtypeStruct((B, Q, NF), jnp.float32),  # packed float slab
        jax.ShapeDtypeStruct((B, Q, _NI), jnp.int32),   # packed int slab
    )
    out_specs = (spec3(NF), spec3(_NI))

    return pl.pallas_call(
        _postprocess_kernel,
        out_shape=out_shapes,
        grid=grid,
        in_specs=in_specs,
        out_specs=out_specs,
        compiler_params=pltpu.CompilerParams(
            dimension_semantics=("parallel",)),
    )(pred_logits, pred_boxes, pred_actions, pred_hidx, pred_oidx, scale_fct)


def postprocess_hands23_aod(outputs, target_sizes, threshold=0):
    """JAX/Pallas equivalent of PostProcess(HOIDet=True, task='AOD').forward(...,
    dataset='hands23'). Returns a list of per-image result dicts."""
    assert target_sizes.shape[1] == 2
    out_time = outputs['hoi_recognition_time']
    start_time = time.time()

    img_h = target_sizes[:, 0].astype(jnp.float32)
    img_w = target_sizes[:, 1].astype(jnp.float32)
    scale_fct = jnp.stack([img_w, img_h, img_w, img_h], axis=1)[:, None, :]  # (B,1,4)

    f32_slab, i32_slab = _run_pallas(
        outputs['pred_logits'], outputs['pred_boxes'], outputs['pred_actions'],
        outputs['pred_hidx'], outputs['pred_oidx'], scale_fct)

    hoi_recognition_time = time.time() - start_time + out_time

    # Slice the packed slabs apart (HBM slices are free).
    scores       = f32_slab[..., 0]
    h_idx_score  = f32_slab[..., 1]   # computed by forward; not in the AOD dict
    o_idx_score  = f32_slab[..., 2]   # computed by forward; not in the AOD dict
    pa_max_score = f32_slab[..., 3]
    h_cat_score  = f32_slab[..., 4]
    o_cat_score  = f32_slab[..., 5]
    boxes        = f32_slab[..., 6:10]
    pair_actions = f32_slab[..., 10:]
    labels       = i32_slab[..., 0]
    h_indices    = i32_slab[..., 1]
    o_indices    = i32_slab[..., 2]
    pa_max_index = i32_slab[..., 3]
    h_cat_label  = i32_slab[..., 4]
    o_cat_label  = i32_slab[..., 5]
    del scores, labels, h_idx_score, o_idx_score  # produced, unused by AOD dicts

    # TODO(synk): per-image dict packaging stays as host-side Python glue, like the
    # original module's result-list construction.
    B = boxes.shape[0]
    results = []
    for bi in range(B):
        results.append({
            'h_cat_score': h_cat_score[bi],
            'h_cat_label': h_cat_label[bi],
            'h_index': h_indices[bi],
            'o_cat_score': o_cat_score[bi],
            'o_cat_label': o_cat_label[bi],
            'o_index': o_indices[bi],
            'pair_action': pair_actions[bi],
            'pair_action_max_score': pa_max_score[bi],
            'pair_action_max_index': pa_max_index[bi],
            'boxes': boxes[bi],
            'hoi_recognition_time': hoi_recognition_time,
        })
    return results


def _reference(outputs, target_sizes):
    """Pure-JAX reference for correctness checking."""
    logits = outputs['pred_logits']
    prob = jax.nn.softmax(logits, -1)[..., :-1]
    scores = jnp.max(prob, -1)
    labels = jnp.argmax(prob, -1).astype(jnp.int32)
    b = outputs['pred_boxes']
    cx, cy, w, h = b[..., 0], b[..., 1], b[..., 2], b[..., 3]
    xyxy = jnp.stack([cx - 0.5 * w, cy - 0.5 * h, cx + 0.5 * w, cy + 0.5 * h], -1)
    img_h = target_sizes[:, 0].astype(jnp.float32)
    img_w = target_sizes[:, 1].astype(jnp.float32)
    scale = jnp.stack([img_w, img_h, img_w, img_h], 1)
    boxes = xyxy * scale[:, None, :]
    pa = jax.nn.sigmoid(outputs['pred_actions'])
    h_prob = jax.nn.softmax(outputs['pred_hidx'], -1)
    o_prob = jax.nn.softmax(outputs['pred_oidx'], -1)
    h_idx = jnp.argmax(h_prob, -1).astype(jnp.int32)
    o_idx = jnp.argmax(o_prob, -1).astype(jnp.int32)
    h_cat_score = jnp.take_along_axis(scores, h_idx, axis=1)
    h_cat_label = jnp.take_along_axis(labels, h_idx, axis=1)
    o_cat_score = jnp.take_along_axis(scores, o_idx, axis=1)
    o_cat_label = jnp.take_along_axis(labels, o_idx, axis=1)
    return dict(scores=scores, labels=labels, boxes=boxes, pa=pa,
                h_idx=h_idx, o_idx=o_idx,
                h_score=jnp.max(h_prob, -1), o_score=jnp.max(o_prob, -1),
                pa_max=jnp.max(pa, -1), pa_idx=jnp.argmax(pa, -1).astype(jnp.int32),
                h_cat_score=h_cat_score, h_cat_label=h_cat_label,
                o_cat_score=o_cat_score, o_cat_label=o_cat_label)


if __name__ == "__main__":
    B, Q, C1, A = 2, 8, 5, 4   # batch, queries, classes+1, actions
    key = jax.random.PRNGKey(0)
    ks = jax.random.split(key, 6)
    outputs = {
        'pred_logits':  jax.random.normal(ks[0], (B, Q, C1), jnp.float32),
        'pred_boxes':   jax.random.uniform(ks[1], (B, Q, 4), jnp.float32, 0.1, 0.9),
        'pred_actions': jax.random.normal(ks[2], (B, Q, A), jnp.float32),
        'pred_hidx':    jax.random.normal(ks[3], (B, Q, Q), jnp.float32),
        'pred_oidx':    jax.random.normal(ks[4], (B, Q, Q), jnp.float32),
        'hoi_recognition_time': 0.001,
    }
    target_sizes = jnp.array([[480, 640], [320, 512]], jnp.float32)  # (B, 2) = (h, w)

    results = postprocess_hands23_aod(outputs, target_sizes)
    jax.block_until_ready(results[0]['boxes'])

    # correctness check against a pure-JAX reference
    ref = _reference(outputs, target_sizes)
    for bi in range(B):
        r = results[bi]
        np.testing.assert_allclose(np.asarray(r['boxes']), np.asarray(ref['boxes'][bi]), rtol=1e-5, atol=1e-5)
        np.testing.assert_allclose(np.asarray(r['pair_action']), np.asarray(ref['pa'][bi]), rtol=1e-5, atol=1e-5)
        np.testing.assert_allclose(np.asarray(r['pair_action_max_score']), np.asarray(ref['pa_max'][bi]), rtol=1e-5, atol=1e-5)
        np.testing.assert_array_equal(np.asarray(r['pair_action_max_index']), np.asarray(ref['pa_idx'][bi]))
        np.testing.assert_array_equal(np.asarray(r['h_index']), np.asarray(ref['h_idx'][bi]))
        np.testing.assert_array_equal(np.asarray(r['o_index']), np.asarray(ref['o_idx'][bi]))
        np.testing.assert_allclose(np.asarray(r['h_cat_score']), np.asarray(ref['h_cat_score'][bi]), rtol=1e-5, atol=1e-5)
        np.testing.assert_array_equal(np.asarray(r['h_cat_label']), np.asarray(ref['h_cat_label'][bi]))
        np.testing.assert_allclose(np.asarray(r['o_cat_score']), np.asarray(ref['o_cat_score'][bi]), rtol=1e-5, atol=1e-5)
        np.testing.assert_array_equal(np.asarray(r['o_cat_label']), np.asarray(ref['o_cat_label'][bi]))

    print("KERNEL_OK")
</pallas_src>

<mosaic_0001>
module attributes {stable_mosaic.version = 11 : i64} {
  func.func @_postprocess_kernel(%arg0: i32, %arg1: memref<1x8x5xf32, #tpu.memory_space<vmem>>, %arg2: memref<1x8x4xf32, #tpu.memory_space<vmem>>, %arg3: memref<1x8x4xf32, #tpu.memory_space<vmem>>, %arg4: memref<1x8x8xf32, #tpu.memory_space<vmem>>, %arg5: memref<1x8x8xf32, #tpu.memory_space<vmem>>, %arg6: memref<1x1x4xf32, #tpu.memory_space<vmem>>, %arg7: memref<1x8x14xf32, #tpu.memory_space<vmem>>, %arg8: memref<1x8x6xi32, #tpu.memory_space<vmem>>) attributes {dimension_semantics = [#tpu.dimension_semantics<parallel>], iteration_bounds = array<i64: 2>, scalar_prefetch = 0 : i64, scratch_operands = 0 : i64, tpu.core_type = #tpu.core_type<tc>, window_params = [{transform_indices = @transform_0, window_bounds = array<i64: 1, 8, 5>}, {transform_indices = @transform_1, window_bounds = array<i64: 1, 8, 4>}, {transform_indices = @transform_2, window_bounds = array<i64: 1, 8, 4>}, {transform_indices = @transform_3, window_bounds = array<i64: 1, 8, 8>}, {transform_indices = @transform_4, window_bounds = array<i64: 1, 8, 8>}, {transform_indices = @transform_5, window_bounds = array<i64: 1, 1, 4>}, {transform_indices = @transform_6, window_bounds = array<i64: 1, 8, 14>}, {transform_indices = @transform_7, window_bounds = array<i64: 1, 8, 6>}]} {
    %c0 = arith.constant 0 : index
    %c0_0 = arith.constant 0 : index
    %c0_1 = arith.constant 0 : index
    %0 = vector.load %arg1[%c0, %c0_0, %c0_1] : memref<1x8x5xf32, #tpu.memory_space<vmem>>, vector<1x8x5xf32>
    %cst = arith.constant dense<0xFF800000> : vector<1x8xf32>
    %1 = vector.multi_reduction <maximumf>, %0, %cst [2] : vector<1x8x5xf32> to vector<1x8xf32>
    %2 = vector.shape_cast %1 : vector<1x8xf32> to vector<1x8x1xf32>
    %3 = vector.broadcast %2 : vector<1x8x1xf32> to vector<1x8x5xf32>
    %4 = arith.subf %0, %3 : vector<1x8x5xf32>
    %5 = math.exp %4 : vector<1x8x5xf32>
    %cst_2 = arith.constant dense<0.000000e+00> : vector<1x8xf32>
    %6 = vector.multi_reduction <add>, %5, %cst_2 [2] : vector<1x8x5xf32> to vector<1x8xf32>
    %7 = vector.shape_cast %6 : vector<1x8xf32> to vector<1x8x1xf32>
    %8 = vector.extract_strided_slice %0 {offsets = [0, 0, 0], sizes = [1, 8, 4], strides = [1, 1, 1]} : vector<1x8x5xf32> to vector<1x8x4xf32>
    %cst_3 = arith.constant dense<0xFF800000> : vector<1x8xf32>
    %9 = vector.multi_reduction <maximumf>, %8, %cst_3 [2] : vector<1x8x4xf32> to vector<1x8xf32>
    %10 = vector.shape_cast %9 : vector<1x8xf32> to vector<1x8x1xf32>
    %11 = arith.subf %10, %2 : vector<1x8x1xf32>
    %12 = math.exp %11 : vector<1x8x1xf32>
    %13 = arith.divf %12, %7 : vector<1x8x1xf32>
    %14 = vector.shape_cast %13 : vector<1x8x1xf32> to vector<1x8xf32>
    %15 = tpu.reduce_index %8 {axis = 2 : i32, kind = #tpu.reduction_kind<arg_max>} : vector<1x8x4xf32> -> vector<1x8xi32>
    %c0_4 = arith.constant 0 : index
    %c0_5 = arith.constant 0 : index
    %c0_6 = arith.constant 0 : index
    %16 = vector.load %arg2[%c0_4, %c0_5, %c0_6] : memref<1x8x4xf32, #tpu.memory_space<vmem>>, vector<1x8x4xf32>
    %17 = vector.extract_strided_slice %16 {offsets = [0, 0, 0], sizes = [1, 8, 2], strides = [1, 1, 1]} : vector<1x8x4xf32> to vector<1x8x2xf32>
    %18 = vector.extract_strided_slice %16 {offsets = [0, 0, 2], sizes = [1, 8, 2], strides = [1, 1, 1]} : vector<1x8x4xf32> to vector<1x8x2xf32>
    %cst_7 = arith.constant 5.000000e-01 : f32
    %19 = vector.broadcast %cst_7 : f32 to vector<1x8x2xf32>
    %20 = arith.mulf %19, %18 : vector<1x8x2xf32>
    %21 = arith.subf %17, %20 : vector<1x8x2xf32>
    %22 = arith.addf %17, %20 : vector<1x8x2xf32>
    %23 = tpu.concatenate %21, %22 in 2 : vector<1x8x2xf32>, vector<1x8x2xf32> -> vector<1x8x4xf32>
    %c0_8 = arith.constant 0 : index
    %c0_9 = arith.constant 0 : index
    %c0_10 = arith.constant 0 : index
    %24 = vector.load %arg6[%c0_8, %c0_9, %c0_10] : memref<1x1x4xf32, #tpu.memory_space<vmem>>, vector<1x1x4xf32>
    %25 = vector.broadcast %24 : vector<1x1x4xf32> to vector<1x8x4xf32>
    %26 = arith.mulf %23, %25 : vector<1x8x4xf32>
    %c0_11 = arith.constant 0 : index
    %c0_12 = arith.constant 0 : index
    %c0_13 = arith.constant 0 : index
    %27 = vector.load %arg3[%c0_11, %c0_12, %c0_13] : memref<1x8x4xf32, #tpu.memory_space<vmem>>, vector<1x8x4xf32>
    %cst_14 = arith.constant 0.000000e+00 : f32
    %28 = vector.broadcast %cst_14 : f32 to vector<1x8x4xf32>
    %29 = arith.subf %28, %27 : vector<1x8x4xf32>
    %30 = math.exp %29 : vector<1x8x4xf32>
    %cst_15 = arith.constant 1.000000e+00 : f32
    %31 = vector.broadcast %cst_15 : f32 to vector<1x8x4xf32>
    %32 = arith.addf %31, %30 : vector<1x8x4xf32>
    %cst_16 = arith.constant 1.000000e+00 : f32
    %33 = vector.broadcast %cst_16 : f32 to vector<1x8x4xf32>
    %34 = arith.divf %33, %32 : vector<1x8x4xf32>
    %cst_17 = arith.constant dense<0xFF800000> : vector<1x8xf32>
    %35 = vector.multi_reduction <maximumf>, %34, %cst_17 [2] : vector<1x8x4xf32> to vector<1x8xf32>
    %36 = tpu.reduce_index %34 {axis = 2 : i32, kind = #tpu.reduction_kind<arg_max>} : vector<1x8x4xf32> -> vector<1x8xi32>
    %c0_18 = arith.constant 0 : index
    %c0_19 = arith.constant 0 : index
    %c0_20 = arith.constant 0 : index
    %37 = vector.load %arg4[%c0_18, %c0_19, %c0_20] : memref<1x8x8xf32, #tpu.memory_space<vmem>>, vector<1x8x8xf32>
    %cst_21 = arith.constant dense<0xFF800000> : vector<1x8xf32>
    %38 = vector.multi_reduction <maximumf>, %37, %cst_21 [2] : vector<1x8x8xf32> to vector<1x8xf32>
    %39 = vector.shape_cast %38 : vector<1x8xf32> to vector<1x8x1xf32>
    %40 = vector.broadcast %39 : vector<1x8x1xf32> to vector<1x8x8xf32>
    %41 = arith.subf %37, %40 : vector<1x8x8xf32>
    %42 = math.exp %41 : vector<1x8x8xf32>
    %cst_22 = arith.constant dense<0.000000e+00> : vector<1x8xf32>
    %43 = vector.multi_reduction <add>, %42, %cst_22 [2] : vector<1x8x8xf32> to vector<1x8xf32>
    %cst_23 = arith.constant 1.000000e+00 : f32
    %44 = vector.broadcast %cst_23 : f32 to vector<1x8xf32>
    %45 = arith.divf %44, %43 : vector<1x8xf32>
    %46 = tpu.reduce_index %37 {axis = 2 : i32, kind = #tpu.reduction_kind<arg_max>} : vector<1x8x8xf32> -> vector<1x8xi32>
    %c0_24 = arith.constant 0 : index
    %c0_25 = arith.constant 0 : index
    %c0_26 = arith.constant 0 : index
    %47 = vector.load %arg5[%c0_24, %c0_25, %c0_26] : memref<1x8x8xf32, #tpu.memory_space<vmem>>, vector<1x8x8xf32>
    %cst_27 = arith.constant dense<0xFF800000> : vector<1x8xf32>
    %48 = vector.multi_reduction <maximumf>, %47, %cst_27 [2] : vector<1x8x8xf32> to vector<1x8xf32>
    %49 = vector.shape_cast %48 : vector<1x8xf32> to vector<1x8x1xf32>
    %50 = vector.broadcast %49 : vector<1x8x1xf32> to vector<1x8x8xf32>
    %51 = arith.subf %47, %50 : vector<1x8x8xf32>
    %52 = math.exp %51 : vector<1x8x8xf32>
    %cst_28 = arith.constant dense<0.000000e+00> : vector<1x8xf32>
    %53 = vector.multi_reduction <add>, %52, %cst_28 [2] : vector<1x8x8xf32> to vector<1x8xf32>
    %cst_29 = arith.constant 1.000000e+00 : f32
    %54 = vector.broadcast %cst_29 : f32 to vector<1x8xf32>
    %55 = arith.divf %54, %53 : vector<1x8xf32>
    %56 = tpu.reduce_index %47 {axis = 2 : i32, kind = #tpu.reduction_kind<arg_max>} : vector<1x8x8xf32> -> vector<1x8xi32>
    %57 = tpu.iota {dimensions = array<i32: 2>} : vector<1x8x8xi32>
    %58 = vector.shape_cast %46 : vector<1x8xi32> to vector<1x8x1xi32>
    %59 = vector.broadcast %58 : vector<1x8x1xi32> to vector<1x8x8xi32>
    %60 = arith.cmpi eq, %57, %59 : vector<1x8x8xi32>
    %61 = arith.extui %60 : vector<1x8x8xi1> to vector<1x8x8xi32>
    %62 = arith.sitofp %61 : vector<1x8x8xi32> to vector<1x8x8xf32>
    %63 = vector.shape_cast %56 : vector<1x8xi32> to vector<1x8x1xi32>
    %64 = vector.broadcast %63 : vector<1x8x1xi32> to vector<1x8x8xi32>
    %65 = arith.cmpi eq, %57, %64 : vector<1x8x8xi32>
    %66 = arith.extui %65 : vector<1x8x8xi1> to vector<1x8x8xi32>
    %67 = arith.sitofp %66 : vector<1x8x8xi32> to vector<1x8x8xf32>
    %68 = arith.sitofp %15 : vector<1x8xi32> to vector<1x8xf32>
    %69 = vector.shape_cast %14 : vector<1x8xf32> to vector<1x8x1xf32>
    %70 = vector.shape_cast %68 : vector<1x8xf32> to vector<1x8x1xf32>
    %71 = tpu.concatenate %69, %70 in 2 : vector<1x8x1xf32>, vector<1x8x1xf32> -> vector<1x8x2xf32>
    "tpu.trace_start"() <{level = 10 : i32, message = "bij,bjk->bik"}> : () -> ()
    %cst_30 = arith.constant dense<0.000000e+00> : vector<1x8x2xf32>
    %72 = tpu.matmul %62, %71, %cst_30 {dimension_numbers = #tpu.dot_dimension_numbers<[2], [1], [1], [2], [0, 0, 0, 1, 1, 2], [0], [0]>} : vector<1x8x8xf32>, vector<1x8x2xf32>, vector<1x8x2xf32> -> vector<1x8x2xf32>
    %cst_31 = arith.constant dense<0.000000e+00> : vector<1x8x2xf32>
    %73 = tpu.matmul %67, %71, %cst_31 {dimension_numbers = #tpu.dot_dimension_numbers<[2], [1], [1], [2], [0, 0, 0, 1, 1, 2], [0], [0]>} : vector<1x8x8xf32>, vector<1x8x2xf32>, vector<1x8x2xf32> -> vector<1x8x2xf32>
    "tpu.trace_stop"() : () -> ()
    %74 = vector.extract_strided_slice %72 {offsets = [0, 0, 0], sizes = [1, 8, 1], strides = [1, 1, 1]} : vector<1x8x2xf32> to vector<1x8x1xf32>
    %75 = vector.shape_cast %74 : vector<1x8x1xf32> to vector<1x8xf32>
    %76 = vector.extract_strided_slice %72 {offsets = [0, 0, 1], sizes = [1, 8, 1], strides = [1, 1, 1]} : vector<1x8x2xf32> to vector<1x8x1xf32>
    %77 = vector.shape_cast %76 : vector<1x8x1xf32> to vector<1x8xf32>
    %78 = math.roundeven %77 : vector<1x8xf32>
    %79 = arith.fptosi %78 : vector<1x8xf32> to vector<1x8xi32>
    %80 = vector.extract_strided_slice %73 {offsets = [0, 0, 0], sizes = [1, 8, 1], strides = [1, 1, 1]} : vector<1x8x2xf32> to vector<1x8x1xf32>
    %81 = vector.shape_cast %80 : vector<1x8x1xf32> to vector<1x8xf32>
    %82 = vector.extract_strided_slice %73 {offsets = [0, 0, 1], sizes = [1, 8, 1], strides = [1, 1, 1]} : vector<1x8x2xf32> to vector<1x8x1xf32>
    %83 = vector.shape_cast %82 : vector<1x8x1xf32> to vector<1x8xf32>
    %84 = math.roundeven %83 : vector<1x8xf32>
    %85 = arith.fptosi %84 : vector<1x8xf32> to vector<1x8xi32>
    %86 = vector.shape_cast %14 : vector<1x8xf32> to vector<1x8x1xf32>
    %87 = vector.shape_cast %45 : vector<1x8xf32> to vector<1x8x1xf32>
    %88 = vector.shape_cast %55 : vector<1x8xf32> to vector<1x8x1xf32>
    %89 = vector.shape_cast %35 : vector<1x8xf32> to vector<1x8x1xf32>
    %90 = vector.shape_cast %75 : vector<1x8xf32> to vector<1x8x1xf32>
    %91 = vector.shape_cast %81 : vector<1x8xf32> to vector<1x8x1xf32>
    %92 = tpu.concatenate %86, %87, %88, %89, %90, %91, %26, %34 in 2 : vector<1x8x1xf32>, vector<1x8x1xf32>, vector<1x8x1xf32>, vector<1x8x1xf32>, vector<1x8x1xf32>, vector<1x8x1xf32>, vector<1x8x4xf32>, vector<1x8x4xf32> -> vector<1x8x14xf32>
    %c0_32 = arith.constant 0 : index
    %c0_33 = arith.constant 0 : index
    %c0_34 = arith.constant 0 : index
    %93 = vector.load %arg7[%c0_32, %c0_33, %c0_34] : memref<1x8x14xf32, #tpu.memory_space<vmem>>, vector<1x8x14xf32>
    tpu.vector_store %arg7[%c0_32, %c0_33, %c0_34], %92 {strides = array<i32>} : memref<1x8x14xf32, #tpu.memory_space<vmem>>, vector<1x8x14xf32>,
    %94 = vector.shape_cast %15 : vector<1x8xi32> to vector<1x8x1xi32>
    %95 = vector.shape_cast %46 : vector<1x8xi32> to vector<1x8x1xi32>
    %96 = vector.shape_cast %56 : vector<1x8xi32> to vector<1x8x1xi32>
    %97 = vector.shape_cast %36 : vector<1x8xi32> to vector<1x8x1xi32>
    %98 = vector.shape_cast %79 : vector<1x8xi32> to vector<1x8x1xi32>
    %99 = vector.shape_cast %85 : vector<1x8xi32> to vector<1x8x1xi32>
    %100 = tpu.concatenate %94, %95, %96, %97, %98, %99 in 2 : vector<1x8x1xi32>, vector<1x8x1xi32>, vector<1x8x1xi32>, vector<1x8x1xi32>, vector<1x8x1xi32>, vector<1x8x1xi32> -> vector<1x8x6xi32>
    %c0_35 = arith.constant 0 : index
    %c0_36 = arith.constant 0 : index
    %c0_37 = arith.constant 0 : index
    %101 = vector.load %arg8[%c0_35, %c0_36, %c0_37] : memref<1x8x6xi32, #tpu.memory_space<vmem>>, vector<1x8x6xi32>
    tpu.vector_store %arg8[%c0_35, %c0_36, %c0_37], %100 {strides = array<i32>} : memref<1x8x6xi32, #tpu.memory_space<vmem>>, vector<1x8x6xi32>,
    return
  }
  func.func @transform_0(%arg0: i32) -> (i32, i32, i32) {
    %c0_i32 = arith.constant 0 : i32
    %c0_i32_0 = arith.constant 0 : i32
    %c0_i32_1 = arith.constant 0 : i32
    return %arg0, %c0_i32, %c0_i32_0 : i32, i32, i32
  }
  func.func @transform_1(%arg0: i32) -> (i32, i32, i32) {
    %c0_i32 = arith.constant 0 : i32
    %c0_i32_0 = arith.constant 0 : i32
    %c0_i32_1 = arith.constant 0 : i32
    return %arg0, %c0_i32, %c0_i32_0 : i32, i32, i32
  }
  func.func @transform_2(%arg0: i32) -> (i32, i32, i32) {
    %c0_i32 = arith.constant 0 : i32
    %c0_i32_0 = arith.constant 0 : i32
    %c0_i32_1 = arith.constant 0 : i32
    return %arg0, %c0_i32, %c0_i32_0 : i32, i32, i32
  }
  func.func @transform_3(%arg0: i32) -> (i32, i32, i32) {
    %c0_i32 = arith.constant 0 : i32
    %c0_i32_0 = arith.constant 0 : i32
    %c0_i32_1 = arith.constant 0 : i32
    return %arg0, %c0_i32, %c0_i32_0 : i32, i32, i32
  }
  func.func @transform_4(%arg0: i32) -> (i32, i32, i32) {
    %c0_i32 = arith.constant 0 : i32
    %c0_i32_0 = arith.constant 0 : i32
    %c0_i32_1 = arith.constant 0 : i32
    return %arg0, %c0_i32, %c0_i32_0 : i32, i32, i32
  }
  func.func @transform_5(%arg0: i32) -> (i32, i32, i32) {
    %c0_i32 = arith.constant 0 : i32
    %c0_i32_0 = arith.constant 0 : i32
    %c0_i32_1 = arith.constant 0 : i32
    return %arg0, %c0_i32, %c0_i32_0 : i32, i32, i32
  }
  func.func @transform_6(%arg0: i32) -> (i32, i32, i32) {
    %c0_i32 = arith.constant 0 : i32
    %c0_i32_0 = arith.constant 0 : i32
    %c0_i32_1 = arith.constant 0 : i32
    return %arg0, %c0_i32, %c0_i32_0 : i32, i32, i32
  }
  func.func @transform_7(%arg0: i32) -> (i32, i32, i32) {
    %c0_i32 = arith.constant 0 : i32
    %c0_i32_0 = arith.constant 0 : i32
    %c0_i32_1 = arith.constant 0 : i32
    return %arg0, %c0_i32, %c0_i32_0 : i32, i32, i32
  }
}

</mosaic_0001>

<llo_original>
// kernel: tpu_custom_call.1
$region0: #{tpu_custom_call.1}
  #allocation0 [shape = 'u32[]', space=smem, size = 0x4, offset = 0x4, fixed_abs, tag = 'smem constant byte address 0x4 - core index']
  #allocation1 [shape = 'u32[144,128]{1,0:T(1,128)}', space=vmem, size = 0x12000, scoped, tag = 'internal scratch']
  %s0 = inlined_call_operand.vmem [shape: f32[2,8,5], index: 0, kind: input, shape index: {}]
  %s1 = inlined_call_operand.vmem [shape: f32[2,8,4], index: 1, kind: input, shape index: {}]
  %s2 = inlined_call_operand.vmem [shape: f32[2,8,4], index: 2, kind: input, shape index: {}]
  %s3 = inlined_call_operand.vmem [shape: f32[2,8,8], index: 3, kind: input, shape index: {}]
  %s4 = inlined_call_operand.vmem [shape: f32[2,8,8], index: 4, kind: input, shape index: {}]
  %s5 = inlined_call_operand.vmem [shape: f32[2,1,4], index: 5, kind: input, shape index: {}]
  %s6 = inlined_call_operand.hbm [shape: f32[2,8,14], index: 6, kind: output, shape index: {0}]
  %s7 = inlined_call_operand.vmem [shape: s32[2,8,6], index: 7, kind: output, shape index: {1}]
  %8 = xla_tuple %s6, %s7
  %s9 = sld [smem:[#allocation0]]
  $region65: #{tpu_custom_call.1} parent=0
    _
  %s11 = ssub.s32 1, %s9
  %s12 = scalar_select 0, %s11, %s9
  $region1: #{tpu_custom_call.1} parent=0
    #allocation2 [shape = 'u8[8192]{0}', space=vmem, size = 0x2000, scoped, tag = 'output window, operand 0']
    #allocation3 [shape = 's32[2]{0}', space=sflag, size = 0x8, scoped, tag = 'scoped memory for tpu_custom_call.1']
    %13 = vsyncpa [#allocation3], 0
    %s14 = scalar_lea.sflag [#allocation3], 1
    %15 = vsyncpa %s14, 0
    loop: start=0, step=1, limit=4
    $region2: #{tpu_custom_call.1} parent=1 // loop_pre_header
      _
    $region3: #{tpu_custom_call.1} parent=1 // loop_header
      %s17 = sphi 0, %s21
      %p18 = scmp.ge.s32.totalorder %s17, 4
      %s27 = sphi 0, %s29
      %s30 = sphi 0, %s27
      %s31 = sphi 0, %s30
      %s47 = sphi 0, %s31
      %s53 = sphi 0, %s55
      %s56 = sphi 0, %s53
      %s57 = sphi 0, %s56
      %s73 = sphi 0, %s57
      %s79 = sphi 0, %s81
      %s82 = sphi 0, %s79
      %s83 = sphi 0, %s82
      %s99 = sphi 0, %s83
      %s105 = sphi 0, %s107
      %s108 = sphi 0, %s105
      %s109 = sphi 0, %s108
      %s125 = sphi 0, %s109
      %s131 = sphi 0, %s133
      %s134 = sphi 0, %s131
      %s135 = sphi 0, %s134
      %s151 = sphi 0, %s135
      %s157 = sphi 0, %s159
      %s160 = sphi 0, %s157
      %s161 = sphi 0, %s160
      %s177 = sphi 0, %s161
      %s183 = sphi 0, %s185
      %s186 = sphi 0, %s183
      %s187 = sphi 0, %s186
      %s203 = sphi 0, %s187
      %s209 = sphi 0, %s211
      %s212 = sphi 0, %s209
      %s213 = sphi 0, %s212
      %s229 = sphi 0, %s213
    $region4: #{tpu_custom_call.1} parent=1 // loop_header_branch
      %20 = sbr.rel (%p18) target = $region8
    $region5: #{tpu_custom_call.1} parent=1 // loop_body
      %s22 = ssub.s32 %s17, 1
      %s23 = ssub.s32 %s17, 2
      %s24 = sadd.s32 %s17, 1
      %s25 = ssub.s32 %s17, %s24
      %p26 = scmp.eq.s32.totalorder %s25, 0
      %s28 = sadd.s32 %s27, 1
      %s29 = scalar_select %p26, %s27, %s28
      %p32 = pneg %p26
      %p33 = scmp.eq.s32.totalorder %s17, 1
      %p34 = por %p32, %p33
      %p35 = scmp.ne.s32.totalorder %s27, %s30
      %p36 = scmp.eq.s32.totalorder %s17, 0
      %p37 = por %p35, %p36
      %p38 = scmp.ne.s32.totalorder %s27, %s30
      %p39 = scmp.eq.s32.totalorder %s22, 1
      %p40 = por %p38, %p39
      %p41 = scmp.ne.s32.totalorder %s30, %s31
      %p42 = scmp.eq.s32.totalorder %s22, 0
      %p43 = por %p41, %p42
      %p44 = scmp.ne.s32.totalorder %s30, %s31
      %p45 = scmp.eq.s32.totalorder %s23, 1
      %p46 = por %p44, %p45
      %p48 = scmp.ne.s32.totalorder %s31, %s47
      %p49 = scmp.eq.s32.totalorder %s23, 0
      %p50 = por %p48, %p49
      %s51 = ssub.s32 %s17, %s24
      %p52 = scmp.eq.s32.totalorder %s51, 0
      %s54 = sadd.s32 %s53, 1
      %s55 = scalar_select %p52, %s53, %s54
      %p58 = pneg %p52
      %p59 = scmp.eq.s32.totalorder %s17, 1
      %p60 = por %p58, %p59
      %p61 = scmp.ne.s32.totalorder %s53, %s56
      %p62 = scmp.eq.s32.totalorder %s17, 0
      %p63 = por %p61, %p62
      %p64 = scmp.ne.s32.totalorder %s53, %s56
      %p65 = scmp.eq.s32.totalorder %s22, 1
      %p66 = por %p64, %p65
      %p67 = scmp.ne.s32.totalorder %s56, %s57
      %p68 = scmp.eq.s32.totalorder %s22, 0
      %p69 = por %p67, %p68
      %p70 = scmp.ne.s32.totalorder %s56, %s57
      %p71 = scmp.eq.s32.totalorder %s23, 1
      %p72 = por %p70, %p71
      %p74 = scmp.ne.s32.totalorder %s57, %s73
      %p75 = scmp.eq.s32.totalorder %s23, 0
      %p76 = por %p74, %p75
      %s77 = ssub.s32 %s17, %s24
      %p78 = scmp.eq.s32.totalorder %s77, 0
      %s80 = sadd.s32 %s79, 1
      %s81 = scalar_select %p78, %s79, %s80
      %p84 = pneg %p78
      %p85 = scmp.eq.s32.totalorder %s17, 1
      %p86 = por %p84, %p85
      %p87 = scmp.ne.s32.totalorder %s79, %s82
      %p88 = scmp.eq.s32.totalorder %s17, 0
      %p89 = por %p87, %p88
      %p90 = scmp.ne.s32.totalorder %s79, %s82
      %p91 = scmp.eq.s32.totalorder %s22, 1
      %p92 = por %p90, %p91
      %p93 = scmp.ne.s32.totalorder %s82, %s83
      %p94 = scmp.eq.s32.totalorder %s22, 0
      %p95 = por %p93, %p94
      %p96 = scmp.ne.s32.totalorder %s82, %s83
      %p97 = scmp.eq.s32.totalorder %s23, 1
      %p98 = por %p96, %p97
      %p100 = scmp.ne.s32.totalorder %s83, %s99
      %p101 = scmp.eq.s32.totalorder %s23, 0
      %p102 = por %p100, %p101
      %s103 = ssub.s32 %s17, %s24
      %p104 = scmp.eq.s32.totalorder %s103, 0
      %s106 = sadd.s32 %s105, 1
      %s107 = scalar_select %p104, %s105, %s106
      %p110 = pneg %p104
      %p111 = scmp.eq.s32.totalorder %s17, 1
      %p112 = por %p110, %p111
      %p113 = scmp.ne.s32.totalorder %s105, %s108
      %p114 = scmp.eq.s32.totalorder %s17, 0
      %p115 = por %p113, %p114
      %p116 = scmp.ne.s32.totalorder %s105, %s108
      %p117 = scmp.eq.s32.totalorder %s22, 1
      %p118 = por %p116, %p117
      %p119 = scmp.ne.s32.totalorder %s108, %s109
      %p120 = scmp.eq.s32.totalorder %s22, 0
      %p121 = por %p119, %p120
      %p122 = scmp.ne.s32.totalorder %s108, %s109
      %p123 = scmp.eq.s32.totalorder %s23, 1
      %p124 = por %p122, %p123
      %p126 = scmp.ne.s32.totalorder %s109, %s125
      %p127 = scmp.eq.s32.totalorder %s23, 0
      %p128 = por %p126, %p127
      %s129 = ssub.s32 %s17, %s24
      %p130 = scmp.eq.s32.totalorder %s129, 0
      %s132 = sadd.s32 %s131, 1
      %s133 = scalar_select %p130, %s131, %s132
      %p136 = pneg %p130
      %p137 = scmp.eq.s32.totalorder %s17, 1
      %p138 = por %p136, %p137
      %p139 = scmp.ne.s32.totalorder %s131, %s134
      %p140 = scmp.eq.s32.totalorder %s17, 0
      %p141 = por %p139, %p140
      %p142 = scmp.ne.s32.totalorder %s131, %s134
      %p143 = scmp.eq.s32.totalorder %s22, 1
      %p144 = por %p142, %p143
      %p145 = scmp.ne.s32.totalorder %s134, %s135
      %p146 = scmp.eq.s32.totalorder %s22, 0
      %p147 = por %p145, %p146
      %p148 = scmp.ne.s32.totalorder %s134, %s135
      %p149 = scmp.eq.s32.totalorder %s23, 1
      %p150 = por %p148, %p149
      %p152 = scmp.ne.s32.totalorder %s135, %s151
      %p153 = scmp.eq.s32.totalorder %s23, 0
      %p154 = por %p152, %p153
      %s155 = ssub.s32 %s17, %s24
      %p156 = scmp.eq.s32.totalorder %s155, 0
      %s158 = sadd.s32 %s157, 1
      %s159 = scalar_select %p156, %s157, %s158
      %p162 = pneg %p156
      %p163 = scmp.eq.s32.totalorder %s17, 1
      %p164 = por %p162, %p163
      %p165 = scmp.ne.s32.totalorder %s157, %s160
      %p166 = scmp.eq.s32.totalorder %s17, 0
      %p167 = por %p165, %p166
      %p168 = scmp.ne.s32.totalorder %s157, %s160
      %p169 = scmp.eq.s32.totalorder %s22, 1
      %p170 = por %p168, %p169
      %p171 = scmp.ne.s32.totalorder %s160, %s161
      %p172 = scmp.eq.s32.totalorder %s22, 0
      %p173 = por %p171, %p172
      %p174 = scmp.ne.s32.totalorder %s160, %s161
      %p175 = scmp.eq.s32.totalorder %s23, 1
      %p176 = por %p174, %p175
      %p178 = scmp.ne.s32.totalorder %s161, %s177
      %p179 = scmp.eq.s32.totalorder %s23, 0
      %p180 = por %p178, %p179
      %s181 = ssub.s32 %s17, %s24
      %p182 = scmp.eq.s32.totalorder %s181, 0
      %s184 = sadd.s32 %s183, 1
      %s185 = scalar_select %p182, %s183, %s184
      %p188 = pneg %p182
      %p189 = scmp.eq.s32.totalorder %s17, 1
      %p190 = por %p188, %p189
      %p191 = scmp.ne.s32.totalorder %s183, %s186
      %p192 = scmp.eq.s32.totalorder %s17, 0
      %p193 = por %p191, %p192
      %p194 = scmp.ne.s32.totalorder %s183, %s186
      %p195 = scmp.eq.s32.totalorder %s22, 1
      %p196 = por %p194, %p195
      %p197 = scmp.ne.s32.totalorder %s186, %s187
      %p198 = scmp.eq.s32.totalorder %s22, 0
      %p199 = por %p197, %p198
      %p200 = scmp.ne.s32.totalorder %s186, %s187
      %p201 = scmp.eq.s32.totalorder %s23, 1
      %p202 = por %p200, %p201
      %p204 = scmp.ne.s32.totalorder %s187, %s203
      %p205 = scmp.eq.s32.totalorder %s23, 0
      %p206 = por %p204, %p205
      %s207 = ssub.s32 %s17, %s24
      %p208 = scmp.eq.s32.totalorder %s207, 0
      %s210 = sadd.s32 %s209, 1
      %s211 = scalar_select %p208, %s209, %s210
      %p214 = pneg %p208
      %p215 = scmp.eq.s32.totalorder %s17, 1
      %p216 = por %p214, %p215
      %p217 = scmp.ne.s32.totalorder %s209, %s212
      %p218 = scmp.eq.s32.totalorder %s17, 0
      %p219 = por %p217, %p218
      %p220 = scmp.ne.s32.totalorder %s209, %s212
      %p221 = scmp.eq.s32.totalorder %s22, 1
      %p222 = por %p220, %p221
      %p223 = scmp.ne.s32.totalorder %s212, %s213
      %p224 = scmp.eq.s32.totalorder %s22, 0
      %p225 = por %p223, %p224
      %p226 = scmp.ne.s32.totalorder %s212, %s213
      %p227 = scmp.eq.s32.totalorder %s23, 1
      %p228 = por %p226, %p227
      %p230 = scmp.ne.s32.totalorder %s213, %s229
      %p231 = scmp.eq.s32.totalorder %s23, 0
      %p232 = por %p230, %p231
      %p233 = scmp.le.s32.totalorder 1, %s17
      %p234 = scmp.lt.s32.totalorder %s17, 3
      %p235 = pnand %p233, %p234
      %p236 = pneg %p235
      // Predicated region
      $region9: #{tpu_custom_call.1} parent=5 // pred_check
        _
      $region10: #{tpu_custom_call.1} parent=5 // pred_check_branch
        %238 = sbr.rel (%p235) target = $region12
      $region11: #{tpu_custom_call.1} parent=5 // pred_region
        %s239 = ssub.s32 %s17, 1
      $region12: #{tpu_custom_call.1} parent=5 // pred_fallthru
        _
      %p240 = scmp.lt.s32.totalorder %s17, 2
      // Predicated region
      $region13: #{tpu_custom_call.1} parent=5 // pred_check
        %p241 = pneg %p240
      $region14: #{tpu_custom_call.1} parent=5 // pred_check_branch
        %243 = sbr.rel (%p241) target = $region16
      $region15: #{tpu_custom_call.1} parent=5 // pred_region
        // Predicated region
        $region17: #{tpu_custom_call.1} parent=15 // pred_check
          %p244 = pneg %p37
        $region18: #{tpu_custom_call.1} parent=15 // pred_check_branch
          %246 = sbr.rel (%p244) target = $region20
        $region19: #{tpu_custom_call.1} parent=15 // pred_region
          %p247 = scmp.lt.s32.totalorder %s17, 1
          %s248 = scalar_select %p247, %s17, 1
          %s249 = smul.addr %s248, 8
          %s250 = scalar_lea.vmem %s0, %s249
        $region20: #{tpu_custom_call.1} parent=15 // pred_fallthru
          _
        // Predicated region
        $region21: #{tpu_custom_call.1} parent=15 // pred_check
          %p251 = pneg %p63
        $region22: #{tpu_custom_call.1} parent=15 // pred_check_branch
          %253 = sbr.rel (%p251) target = $region24
        $region23: #{tpu_custom_call.1} parent=15 // pred_region
          %p254 = scmp.lt.s32.totalorder %s17, 1
          %s255 = scalar_select %p254, %s17, 1
          %s256 = smul.addr %s255, 8
          %s257 = scalar_lea.vmem %s1, %s256
        $region24: #{tpu_custom_call.1} parent=15 // pred_fallthru
          _
        // Predicated region
        $region25: #{tpu_custom_call.1} parent=15 // pred_check
          %p258 = pneg %p89
        $region26: #{tpu_custom_call.1} parent=15 // pred_check_branch
          %260 = sbr.rel (%p258) target = $region28
        $region27: #{tpu_custom_call.1} parent=15 // pred_region
          %p261 = scmp.lt.s32.totalorder %s17, 1
          %s262 = scalar_select %p261, %s17, 1
          %s263 = smul.addr %s262, 8
          %s264 = scalar_lea.vmem %s2, %s263
        $region28: #{tpu_custom_call.1} parent=15 // pred_fallthru
          _
        // Predicated region
        $region29: #{tpu_custom_call.1} parent=15 // pred_check
          %p265 = pneg %p115
        $region30: #{tpu_custom_call.1} parent=15 // pred_check_branch
          %267 = sbr.rel (%p265) target = $region32
        $region31: #{tpu_custom_call.1} parent=15 // pred_region
          %p268 = scmp.lt.s32.totalorder %s17, 1
          %s269 = scalar_select %p268, %s17, 1
          %s270 = smul.addr %s269, 8
          %s271 = scalar_lea.vmem %s3, %s270
        $region32: #{tpu_custom_call.1} parent=15 // pred_fallthru
          _
        // Predicated region
        $region33: #{tpu_custom_call.1} parent=15 // pred_check
          %p272 = pneg %p141
        $region34: #{tpu_custom_call.1} parent=15 // pred_check_branch
          %274 = sbr.rel (%p272) target = $region36
        $region35: #{tpu_custom_call.1} parent=15 // pred_region
          %p275 = scmp.lt.s32.totalorder %s17, 1
          %s276 = scalar_select %p275, %s17, 1
          %s277 = smul.addr %s276, 8
          %s278 = scalar_lea.vmem %s4, %s277
        $region36: #{tpu_custom_call.1} parent=15 // pred_fallthru
          _
        // Predicated region
        $region37: #{tpu_custom_call.1} parent=15 // pred_check
          %p279 = pneg %p167
        $region38: #{tpu_custom_call.1} parent=15 // pred_check_branch
          %281 = sbr.rel (%p279) target = $region40
        $region39: #{tpu_custom_call.1} parent=15 // pred_region
          %p282 = scmp.lt.s32.totalorder %s17, 1
          %s283 = scalar_select %p282, %s17, 1
          %s284 = scalar_lea.vmem %s5, %s283
        $region40: #{tpu_custom_call.1} parent=15 // pred_fallthru
          _
      $region16: #{tpu_custom_call.1} parent=5 // pred_fallthru
        _
      %p285 = scmp.le.s32.totalorder 1, %s17
      %p286 = scmp.lt.s32.totalorder %s17, 3
      %p287 = pnand %p285, %p286
      %p288 = pneg %p287
      // Predicated region
      $region41: #{tpu_custom_call.1} parent=5 // pred_check
        _
      $region42: #{tpu_custom_call.1} parent=5 // pred_check_branch
        %290 = sbr.rel (%p287) target = $region44
      $region43: #{tpu_custom_call.1} parent=5 // pred_region
        %s291 = ssub.s32 %s17, 1
        %p292 = scmp.lt.s32.totalorder %s22, 1
        %s293 = scalar_select %p292, %s22, 1
        %s294 = smul.addr %s293, 8
        %s295 = scalar_lea.vmem %s0, %s294
        %p296 = pneg %p43
        %p297 = pneg %p40
        %p298 = scmp.lt.s32.totalorder %s22, 1
        %s299 = scalar_select %p298, %s22, 1
        %s300 = smul.addr %s299, 8
        %s301 = scalar_lea.vmem %s1, %s300
        %p302 = pneg %p69
        %p303 = pneg %p66
        %p304 = scmp.lt.s32.totalorder %s22, 1
        %s305 = scalar_select %p304, %s22, 1
        %s306 = smul.addr %s305, 8
        %s307 = scalar_lea.vmem %s2, %s306
        %p308 = pneg %p95
        %p309 = pneg %p92
        %p310 = scmp.lt.s32.totalorder %s22, 1
        %s311 = scalar_select %p310, %s22, 1
        %s312 = smul.addr %s311, 8
        %s313 = scalar_lea.vmem %s3, %s312
        %p314 = pneg %p121
        %p315 = pneg %p118
        %p316 = scmp.lt.s32.totalorder %s22, 1
        %s317 = scalar_select %p316, %s22, 1
        %s318 = smul.addr %s317, 8
        %s319 = scalar_lea.vmem %s4, %s318
        %p320 = pneg %p147
        %p321 = pneg %p144
        %p322 = scmp.lt.s32.totalorder %s22, 1
        %s323 = scalar_select %p322, %s22, 1
        %s324 = scalar_lea.vmem %s5, %s323
        %p325 = pneg %p173
        %p326 = pneg %p170
        %p327 = pneg %p199
        %p328 = pneg %p196
        %s329 = sand.u32 %s186, 1
        %s330 = scalar_lea.sflag [#allocation3], %s329
        %s331 = sand.u32 %s186, 1
        %s332 = smul.addr %s331, 8
        %s333 = scalar_lea.vmem [#allocation2], %s332
        %p334 = pneg %p225
        %p335 = pneg %p222
        %p336 = scmp.lt.s32.totalorder %s22, 1
        %s337 = scalar_select %p336, %s22, 1
        %s338 = smul.addr %s337, 8
        %s339 = scalar_lea.vmem %s7, %s338
        %p340 = scmp.lt.s32.totalorder %s22, 1
        %s341 = scalar_select %p340, %s22, 1
        %s342 = smul.addr %s341, 8
        %s343 = scalar_lea.vmem %s0, %s342
        %p344 = scmp.lt.s32.totalorder %s22, 1
        %s345 = scalar_select %p344, %s22, 1
        %s346 = smul.addr %s345, 8
        %s347 = scalar_lea.vmem %s1, %s346
        %p348 = scmp.lt.s32.totalorder %s22, 1
        %s349 = scalar_select %p348, %s22, 1
        %s350 = smul.addr %s349, 8
        %s351 = scalar_lea.vmem %s2, %s350
        %p352 = scmp.lt.s32.totalorder %s22, 1
        %s353 = scalar_select %p352, %s22, 1
        %s354 = smul.addr %s353, 8
        %s355 = scalar_lea.vmem %s3, %s354
        %p356 = scmp.lt.s32.totalorder %s22, 1
        %s357 = scalar_select %p356, %s22, 1
        %s358 = smul.addr %s357, 8
        %s359 = scalar_lea.vmem %s4, %s358
        %p360 = scmp.lt.s32.totalorder %s22, 1
        %s361 = scalar_select %p360, %s22, 1
        %s362 = scalar_lea.vmem %s5, %s361
        %p363 = scmp.lt.s32.totalorder %s22, 1
        %s364 = scalar_select %p363, %s22, 1
        %s365 = smul.addr %s364, 8
        %s366 = scalar_lea.vmem %s7, %s365
        %v367 = vld [vmem:[%s343] sm:$0xff]
        %vm368 = vcmask 39936
        %v369 = vsel %vm368, %v367, -inf
        %370 = vmax.xlane.f32.xlu0 %v369
        %v371 = vpop.xlane.xlu0 %370
        %v372 = vsub.f32 %v367, %v371
        %v373 = vmul.f32 %v372, 1.442695
        %v374 = vpow.pop %v373
        %v375 = vsel %vm368, %v374, 0.0
        %376 = vadd.xlane.f32.xlu0 %v375
        %v377 = vpop.xlane.xlu0 %376
        %vm378 = vcmask 31744
        %v379 = vsel %vm378, %v367, -inf
        %380 = vmax.xlane.f32.xlu0 %v379
        %v381 = vpop.xlane.xlu0 %380
        %v382 = vsub.f32 %v381, %v371
        %v383 = vmul.f32 %v382, 1.442695
        %v384 = vpow.pop %v383
        %v385 = vrcp.pop %v377
        %v386 = vmul.f32 %v384, %v385
        %387 = vmax.index.xlane.f32.xlu0 %v379
        %v388 = vpop.xlane.xlu0 %387
        %v389 = vld [vmem:[%s347] sm:$0xff]
        %v390 = vmul.f32 %v389, 0.5
        %392 = vrot.lane.b32.xlu0 %v390, 126
        %v393 = vpop.permute.xlu0 %392
        %v395 = vsub.f32 %v389, %v393
        %v396 = vadd.f32 %v389, %v393
        %398 = vrot.lane.b32.xlu0 %v396, 2
        %v399 = vpop.permute.xlu0 %398
        %vm401 = vcmask 15360
        %v402 = vsel %vm401, %v395, %v399
        %v403 = vld [vmem:[%s362] sm:$0x1]
        %v405 = vlaneseq
        %v406 = vshrl.u32 %v405, 7
        %v407 = vsub.s32 0, %v406
        %v408 = vrot.slane %v403, %v407
        %v410 = vmul.f32 %v402, %v408
        %v411 = vld [vmem:[%s351] sm:$0xff]
        %v412 = vsub.f32 0.0, %v411
        %v413 = vmul.f32 %v412, 1.442695
        %v414 = vpow.pop %v413
        %v415 = vadd.f32 %v414, 1.0
        %v416 = vrcp.pop %v415
        %v417 = vmul.f32 1.0, %v416
        %v418 = vsel %vm378, %v417, -inf
        %419 = vmax.xlane.f32.xlu0 %v418
        %v420 = vpop.xlane.xlu0 %419
        %421 = vmax.index.xlane.f32.xlu0 %v418
        %v422 = vpop.xlane.xlu0 %421
        %v423 = vld [vmem:[%s355] sm:$0xff]
        %vm424 = vcmask 64512
        %v425 = vsel %vm424, %v423, -inf
        %426 = vmax.xlane.f32.xlu0 %v425
        %v427 = vpop.xlane.xlu0 %426
        %v428 = vsub.f32 %v423, %v427
        %v429 = vmul.f32 %v428, 1.442695
        %v430 = vpow.pop %v429
        %v431 = vsel %vm424, %v430, 0.0
        %432 = vadd.xlane.f32.xlu0 %v431
        %v433 = vpop.xlane.xlu0 %432
        %v434 = vrcp.pop %v433
        %v435 = vmul.f32 1.0, %v434
        %436 = vmax.index.xlane.f32.xlu0 %v425
        %v437 = vpop.xlane.xlu0 %436
        %v438 = vld [vmem:[%s359] sm:$0xff]
        %v439 = vsel %vm424, %v438, -inf
        %440 = vmax.xlane.f32.xlu0 %v439
        %v441 = vpop.xlane.xlu0 %440
        %v442 = vsub.f32 %v438, %v441
        %v443 = vmul.f32 %v442, 1.442695
        %v444 = vpow.pop %v443
        %v445 = vsel %vm424, %v444, 0.0
        %446 = vadd.xlane.f32.xlu0 %v445
        %v447 = vpop.xlane.xlu0 %446
        %v448 = vrcp.pop %v447
        %v449 = vmul.f32 1.0, %v448
        %450 = vmax.index.xlane.f32.xlu0 %v439
        %v451 = vpop.xlane.xlu0 %450
        %v452 = vlaneseq
        %v453 = vand.u32 %v452, 127
        %vm454 = vcmp.eq.s32.totalorder %v453, %v437
        %v455 = vsel %vm454, 1, 0
        %v456 = vcvt.s32.f32 %v455
        %vm457 = vcmp.eq.s32.totalorder %v453, %v451
        %v458 = vsel %vm457, 1, 0
        %v459 = vcvt.s32.f32 %v458
        %v460 = vcvt.s32.f32 %v388
        %vm461 = vcmask 7168
        %v462 = vsel %vm461, %v386, %v460
        %v464 = vsel %vm424, %v456, 0
        %466 = vmatprep.subr.mxu0 0.0
        %467 = vmatpush1.msra.mxu0 0.0
        %468 = vmatprep.subr.mxu0 0.0
        %469 = vmatpush1.msra.mxu0 0.0
        %470 = vmatprep.subr.mxu0 0.0
        %471 = vmatpush1.msra.mxu0 0.0
        %472 = vmatprep.subr.mxu0 0.0
        %473 = vmatpush1.msra.mxu0 0.0
        %474 = vmatprep.subr.mxu0 0.0
        %475 = vmatpush1.msra.mxu0 0.0
        %476 = vmatprep.subr.mxu0 0.0
        %477 = vmatpush1.msra.mxu0 0.0
        %478 = vmatprep.subr.mxu0 0.0
        %479 = vmatpush1.msra.mxu0 0.0
        %480 = vmatprep.subr.mxu0 0.0
        %481 = vmatpush1.msra.mxu0 0.0
        %482 = vmatprep.subr.mxu0 0.0
        %483 = vmatpush1.msra.mxu0 0.0
        %484 = vmatprep.subr.mxu0 0.0
        %485 = vmatpush1.msra.mxu0 0.0
        %486 = vmatprep.subr.mxu0 0.0
        %487 = vmatpush1.msra.mxu0 0.0
        %488 = vmatprep.subr.mxu0 0.0
        %489 = vmatpush1.msra.mxu0 0.0
        %490 = vmatprep.subr.mxu0 0.0
        %491 = vmatpush1.msra.mxu0 0.0
        %492 = vmatprep.subr.mxu0 0.0
        %493 = vmatpush1.msra.mxu0 0.0
        %494 = vmatprep.subr.mxu0 0.0
        %495 = vmatpush1.msra.mxu0 0.0
        %496 = vmatprep.subr.mxu0 0.0
        %497 = vmatpush1.msra.mxu0 %v462
        %498 = vmatprep.subr.mxu0 0.0
        %499 = vmatpush2.msra.mxu0 0.0
        %500 = vmatprep.subr.mxu0 0.0
        %501 = vmatpush2.msra.mxu0 0.0
        %502 = vmatprep.subr.mxu0 0.0
        %503 = vmatpush2.msra.mxu0 0.0
        %504 = vmatprep.subr.mxu0 0.0
        %505 = vmatpush2.msra.mxu0 0.0
        %506 = vmatprep.subr.mxu0 0.0
        %507 = vmatpush2.msra.mxu0 0.0
        %508 = vmatprep.subr.mxu0 0.0
        %509 = vmatpush2.msra.mxu0 0.0
        %510 = vmatprep.subr.mxu0 0.0
        %511 = vmatpush2.msra.mxu0 0.0
        %512 = vmatprep.subr.mxu0 0.0
        %513 = vmatpush2.msra.mxu0 0.0
        %514 = vmatprep.subr.mxu0 0.0
        %515 = vmatpush2.msra.mxu0 0.0
        %516 = vmatprep.subr.mxu0 0.0
        %517 = vmatpush2.msra.mxu0 0.0
        %518 = vmatprep.subr.mxu0 0.0
        %519 = vmatpush2.msra.mxu0 0.0
        %520 = vmatprep.subr.mxu0 0.0
        %521 = vmatpush2.msra.mxu0 0.0
        %522 = vmatprep.subr.mxu0 0.0
        %523 = vmatpush2.msra.mxu0 0.0
        %524 = vmatprep.subr.mxu0 0.0
        %525 = vmatpush2.msra.mxu0 0.0
        %526 = vmatprep.subr.mxu0 0.0
        %527 = vmatpush2.msra.mxu0 0.0
        %528 = vmatprep.subr.mxu0 0.0
        %529 = vmatpush2.msra.mxu0 0.0
        %530 = vmatprep.mubr.f32.mxu0 0.0
        %531 = vmatmul.mubr.f32.gmra.mxu0 %v464
        %v532 = vpop.f32.mrf.mxu0
        %v533 = vadd.f32 0.0, %v532
        %v534 = vpop.f32.mrf.mxu0
        %535 = vdwg.mxu0
        %v537 = vsel %vm424, %v459, 0
        %539 = vmatprep.subr.mxu0 0.0
        %540 = vmatpush1.msra.mxu0 0.0
        %541 = vmatprep.subr.mxu0 0.0
        %542 = vmatpush1.msra.mxu0 0.0
        %543 = vmatprep.subr.mxu0 0.0
        %544 = vmatpush1.msra.mxu0 0.0
        %545 = vmatprep.subr.mxu0 0.0
        %546 = vmatpush1.msra.mxu0 0.0
        %547 = vmatprep.subr.mxu0 0.0
        %548 = vmatpush1.msra.mxu0 0.0
        %549 = vmatprep.subr.mxu0 0.0
        %550 = vmatpush1.msra.mxu0 0.0
        %551 = vmatprep.subr.mxu0 0.0
        %552 = vmatpush1.msra.mxu0 0.0
        %553 = vmatprep.subr.mxu0 0.0
        %554 = vmatpush1.msra.mxu0 0.0
        %555 = vmatprep.subr.mxu0 0.0
        %556 = vmatpush1.msra.mxu0 0.0
        %557 = vmatprep.subr.mxu0 0.0
        %558 = vmatpush1.msra.mxu0 0.0
        %559 = vmatprep.subr.mxu0 0.0
        %560 = vmatpush1.msra.mxu0 0.0
        %561 = vmatprep.subr.mxu0 0.0
        %562 = vmatpush1.msra.mxu0 0.0
        %563 = vmatprep.subr.mxu0 0.0
        %564 = vmatpush1.msra.mxu0 0.0
        %565 = vmatprep.subr.mxu0 0.0
        %566 = vmatpush1.msra.mxu0 0.0
        %567 = vmatprep.subr.mxu0 0.0
        %568 = vmatpush1.msra.mxu0 0.0
        %569 = vmatprep.subr.mxu0 0.0
        %570 = vmatpush1.msra.mxu0 %v462
        %571 = vmatprep.subr.mxu0 0.0
        %572 = vmatpush2.msra.mxu0 0.0
        %573 = vmatprep.subr.mxu0 0.0
        %574 = vmatpush2.msra.mxu0 0.0
        %575 = vmatprep.subr.mxu0 0.0
        %576 = vmatpush2.msra.mxu0 0.0
        %577 = vmatprep.subr.mxu0 0.0
        %578 = vmatpush2.msra.mxu0 0.0
        %579 = vmatprep.subr.mxu0 0.0
        %580 = vmatpush2.msra.mxu0 0.0
        %581 = vmatprep.subr.mxu0 0.0
        %582 = vmatpush2.msra.mxu0 0.0
        %583 = vmatprep.subr.mxu0 0.0
        %584 = vmatpush2.msra.mxu0 0.0
        %585 = vmatprep.subr.mxu0 0.0
        %586 = vmatpush2.msra.mxu0 0.0
        %587 = vmatprep.subr.mxu0 0.0
        %588 = vmatpush2.msra.mxu0 0.0
        %589 = vmatprep.subr.mxu0 0.0
        %590 = vmatpush2.msra.mxu0 0.0
        %591 = vmatprep.subr.mxu0 0.0
        %592 = vmatpush2.msra.mxu0 0.0
        %593 = vmatprep.subr.mxu0 0.0
        %594 = vmatpush2.msra.mxu0 0.0
        %595 = vmatprep.subr.mxu0 0.0
        %596 = vmatpush2.msra.mxu0 0.0
        %597 = vmatprep.subr.mxu0 0.0
        %598 = vmatpush2.msra.mxu0 0.0
        %599 = vmatprep.subr.mxu0 0.0
        %600 = vmatpush2.msra.mxu0 0.0
        %601 = vmatprep.subr.mxu0 0.0
        %602 = vmatpush2.msra.mxu0 0.0
        %603 = vmatprep.mubr.f32.mxu0 0.0
        %604 = vmatmul.mubr.f32.gmra.mxu0 %v537
        %v605 = vpop.f32.mrf.mxu0
        %v606 = vadd.f32 0.0, %v605
        %v607 = vpop.f32.mrf.mxu0
        %608 = vdwg.mxu0
        %v609 = vcvt.f32.s32.ties.to.even %v533
        %v610 = vcvt.f32.s32.ties.to.even %v606
        %612 = vrot.lane.b32.xlu0 %v533, 4
        %v613 = vpop.permute.xlu0 %612
        %616 = vrot.lane.b32.xlu0 %v606, 5
        %v617 = vpop.permute.xlu0 %616
        %620 = vrot.lane.b32.xlu0 %v410, 6
        %v621 = vpop.permute.xlu0 %620
        %624 = vrot.lane.b32.xlu0 %v417, 10
        %v625 = vpop.permute.xlu0 %624
        %v627 = vsel %vm461, %v386, %v435
        %v628 = vsel %vm401, %v627, %v449
        %vm629 = vcmask 23552
        %v630 = vsel %vm629, %v628, %v420
        %v631 = vsel %vm378, %v630, %v613
        %v632 = vsel %vm368, %v631, %v617
        %vm633 = vcmask 48128
        %v634 = vsel %vm633, %v632, %v621
        %vm635 = vcmask 80896
        %v636 = vsel %vm635, %v634, %v625
        %vm637 = vcmask 113664
        %638 = vst.msk [vmem:[%s333] sm:$0xff] %vm637, %v636
        %639 = vrot.lane.b32.xlu0 %v609, 3
        %v640 = vpop.permute.xlu0 %639
        %641 = vrot.lane.b32.xlu0 %v610, 4
        %v642 = vpop.permute.xlu0 %641
        %v643 = vsel %vm461, %v388, %v437
        %v644 = vsel %vm401, %v643, %v451
        %v645 = vsel %vm629, %v644, %v422
        %v646 = vsel %vm378, %v645, %v640
        %v647 = vsel %vm368, %v646, %v642
        %648 = vst.msk [vmem:[%s366] sm:$0xff] %vm633, %v647
        %s649 = sand.u32 %s186, 1
        %s650 = scalar_lea.sflag [#allocation3], %s649
        %s651 = sand.u32 %s186, 1
        %s652 = smul.addr %s651, 8
        %s653 = scalar_lea.vmem [#allocation2], %s652
        %p654 = scmp.lt.s32.totalorder %s22, 1
        %s655 = scalar_select %p654, %s22, 1
        %s656 = smul.addr %s655, 8
        %s657 = scalar_lea.vmem %s7, %s656
        // Predicated region
        $region45: #{tpu_custom_call.1} parent=43 // pred_check
          %p658 = pneg %p196
        $region46: #{tpu_custom_call.1} parent=43 // pred_check_branch
          %660 = sbr.rel (%p658) target = $region48
        $region47: #{tpu_custom_call.1} parent=43 // pred_region
          %s662 = ssub.s32 128, 128
          %663 = vsyncadd %s650, %s662
          %s664 = smul.addr %s22, 128
          %s665 = scalar_lea.hbm %s6, %s664
          %s667 = sshll.u32 %s653, 4
          %s668 = int_to_ptr.vmem [resolvable:$true] %s667
          %670 = dma.vmem_to_hbm [thread:$0]  %s668, 128, %s665, %s650
        $region48: #{tpu_custom_call.1} parent=43 // pred_fallthru
          _
        // Predicated region
        $region49: #{tpu_custom_call.1} parent=43 // pred_check
          %p671 = pneg %p222
        $region50: #{tpu_custom_call.1} parent=43 // pred_check_branch
          %673 = sbr.rel (%p671) target = $region52
        $region51: #{tpu_custom_call.1} parent=43 // pred_region
          _
        $region52: #{tpu_custom_call.1} parent=43 // pred_fallthru
          _
      $region44: #{tpu_custom_call.1} parent=5 // pred_fallthru
        _
      %p674 = scmp.le.s32.totalorder 2, %s17
      // Predicated region
      $region53: #{tpu_custom_call.1} parent=5 // pred_check
        %p675 = pneg %p674
      $region54: #{tpu_custom_call.1} parent=5 // pred_check_branch
        %677 = sbr.rel (%p675) target = $region56
      $region55: #{tpu_custom_call.1} parent=5 // pred_region
        %s678 = ssub.s32 %s17, 2
        // Predicated region
        $region57: #{tpu_custom_call.1} parent=55 // pred_check
          %p679 = pneg %p202
        $region58: #{tpu_custom_call.1} parent=55 // pred_check_branch
          %681 = sbr.rel (%p679) target = $region60
        $region59: #{tpu_custom_call.1} parent=55 // pred_region
          %s682 = sand.u32 %s187, 1
          %s683 = scalar_lea.sflag [#allocation3], %s682
          %s684 = sand.u32 %s187, 1
          %s685 = smul.addr %s684, 8
          %s686 = scalar_lea.vmem [#allocation2], %s685
          %687 = dma.done %s683, 128
        $region60: #{tpu_custom_call.1} parent=55 // pred_fallthru
          _
        // Predicated region
        $region61: #{tpu_custom_call.1} parent=55 // pred_check
          %p688 = pneg %p228
        $region62: #{tpu_custom_call.1} parent=55 // pred_check_branch
          %690 = sbr.rel (%p688) target = $region64
        $region63: #{tpu_custom_call.1} parent=55 // pred_region
          %p691 = scmp.lt.s32.totalorder %s23, 1
          %s692 = scalar_select %p691, %s23, 1
          %s693 = smul.addr %s692, 8
          %s694 = scalar_lea.vmem %s7, %s693
        $region64: #{tpu_custom_call.1} parent=55 // pred_fallthru
          _
      $region56: #{tpu_custom_call.1} parent=5 // pred_fallthru
        _
    $region6: #{tpu_custom_call.1} parent=1 // loop_footer
      %s21 = sadd.s32 1, %s17
    $region7: #{tpu_custom_call.1} parent=1 // loop_footer_branch
      %16 = sbr.rel target = $region3
    $region8: #{tpu_custom_call.1} parent=1 // loop_exit
      _
    %695 = vsyncpa [#allocation3], 1
    %s696 = scalar_lea.sflag [#allocation3], 1
    %697 = vsyncpa %s696, 1

</llo_original>
